<compile_context>
chip_gen: v6e
topology: v6e:2x2x1
jax: 0.10.0
libtpu: 0.0.40
codegen_flags: <defaults>
</compile_context>

<pallas_src>
import functools

import jax
import jax.numpy as jnp
from jax.experimental import pallas as pl
from jax.experimental.pallas import tpu as pltpu


def _round_up(x, m):
    return ((x + m - 1) // m) * m


def _homogeneous_shape_kernel(params_ref, mean_ref, mean_sw_ref,
                              comp_ref, comp_sw_ref, out_ref, *, K):
    # params_ref : (TB, K+4)   rows = batch, lanes = [shape coeffs, scale, rot, tx, ty]
    # mean_ref   : (1, 2N)     mean shape, interleaved [x0, y0, x1, y1, ...]
    # mean_sw_ref: (1, 2N)     mean shape, swapped+signed [y0, -x0, y1, -x1, ...]
    # comp_ref   : (K, 2N)     eigen shapes, interleaved
    # comp_sw_ref: (K, 2N)     eigen shapes, swapped+signed
    # out_ref    : (TB, 2N)    transformed shapes, interleaved
    coefs = params_ref[:, 0:K]                                       # (TB, K)
    scale = params_ref[:, K:K + 1]                                   # (TB, 1)
    rot = params_ref[:, K + 1:K + 2]                                 # (TB, 1)
    tx = params_ref[:, K + 2:K + 3]                                  # (TB, 1)
    ty = params_ref[:, K + 3:K + 4]                                  # (TB, 1)

    # ShapeLayer: mean + coeffs @ components  (MXU, (TB,K)@(K,2N), f32 accumulate).
    shape = mean_ref[...] + jnp.dot(coefs, comp_ref[...],
                                    preferred_element_type=jnp.float32)      # (TB, 2N)
    swapped = mean_sw_ref[...] + jnp.dot(coefs, comp_sw_ref[...],
                                         preferred_element_type=jnp.float32)  # (TB, 2N)

    # Homogeneous 2D transform parameters, vectorized over the batch tile (EUP).
    a = scale * jnp.cos(rot)                                         # (TB, 1) = s*cos
    b = scale * jnp.sin(rot)                                         # (TB, 1) = s*sin

    # Translation: even lanes (x coords) get tx, odd lanes (y coords) get ty.
    tn = out_ref.shape[-1]
    lane = jax.lax.broadcasted_iota(jnp.int32, (1, tn), 1)
    is_even = (lane & 1) == 0
    t = jnp.where(is_even, tx, ty)                                   # (TB, 2N)

    # out_x =  s*cos*x + s*sin*y + tx ;  out_y = -s*sin*x + s*cos*y + ty
    out_ref[...] = a * shape + b * swapped + t


def prepare_shape_constants(shape_mean, shape_components):
    """One-time re-layout of the PCA basis (mirrors torch module __init__ buffers).

    shape_mean: (N, 2), shape_components: (K, N, 2). Returns flat f32 arrays:
      mean_i  (1, 2N)  interleaved [x0, y0, ...]
      mean_s  (1, 2N)  swapped+signed [y0, -x0, ...]
      comps_i (K, 2N)  interleaved
      comps_s (K, 2N)  swapped+signed
    """
    K, N, D = shape_components.shape
    assert D == 2, "this kernel implements the 2D transformation path"
    mean = shape_mean.astype(jnp.float32)
    comps = shape_components.astype(jnp.float32)
    mean_i = mean.reshape(1, D * N)
    comps_i = comps.reshape(K, D * N)
    mean_s = jnp.stack([mean[:, 1], -mean[:, 0]], axis=-1).reshape(1, D * N)
    comps_s = jnp.stack([comps[:, :, 1], -comps[:, :, 0]], axis=-1).reshape(K, D * N)
    return mean_i, mean_s, comps_i, comps_s


def homogeneous_shape_layer(params, mean_i, mean_s, comps_i, comps_s, *, tile_b=512):
    """params: (B, K+4, 1, 1). Constants from prepare_shape_constants.
    Returns (B, N, 2) transformed shapes (matches torch module output)."""
    B = params.shape[0]
    P = params.shape[1]
    K, TN = comps_i.shape           # TN = 2N
    assert P == K + 4

    params2 = params.reshape(B, P).astype(jnp.float32)               # (B, P)

    # Batch tile: multiple of 8 sublanes; pad B so the grid divides evenly.
    tb = min(tile_b, _round_up(B, 8))
    b_pad = _round_up(B, tb)
    if b_pad != B:
        params2 = jnp.pad(params2, ((0, b_pad - B), (0, 0)))

    kernel = functools.partial(_homogeneous_shape_kernel, K=K)

    out_flat = pl.pallas_call(
        kernel,
        out_shape=jax.ShapeDtypeStruct((b_pad, TN), jnp.float32),
        grid_spec=pltpu.PrefetchScalarGridSpec(
            num_scalar_prefetch=0,
            grid=(b_pad // tb,),
            in_specs=[
                pl.BlockSpec((tb, P), lambda i: (i, 0)),     # per-tile params
                pl.BlockSpec((1, TN), lambda i: (0, 0)),     # mean (grid-invariant)
                pl.BlockSpec((1, TN), lambda i: (0, 0)),     # mean swapped
                pl.BlockSpec((K, TN), lambda i: (0, 0)),     # components
                pl.BlockSpec((K, TN), lambda i: (0, 0)),     # components swapped
            ],
            out_specs=pl.BlockSpec((tb, TN), lambda i: (i, 0)),
        ),
        compiler_params=pltpu.CompilerParams(
            dimension_semantics=("parallel",)),
    )(params2, mean_i, mean_s, comps_i, comps_s)

    # Interleaved (B, 2N) -> (B, N, 2) is a pure row-major reshape (no transpose).
    return out_flat[:B].reshape(B, TN // 2, 2)


def _reference_forward(params, shape_mean, shape_components):
    """Pure-JAX reference mirroring the PyTorch module exactly."""
    B = params.shape[0]
    K = shape_components.shape[0]
    p = params.reshape(B, -1)
    shape_coefs = p[:, :K]
    shapes = shape_mean[None] + jnp.einsum("bk,knd->bnd", shape_coefs,
                                           shape_components)
    scale, rot = p[:, K], p[:, K + 1]
    t0, t1 = p[:, K + 2], p[:, K + 3]
    c, s = jnp.cos(rot), jnp.sin(rot)
    x, y = shapes[..., 0], shapes[..., 1]
    ox = x * (scale * c)[:, None] + y * (scale * s)[:, None] + t0[:, None]
    oy = x * (-(scale * s))[:, None] + y * (scale * c)[:, None] + t1[:, None]
    return jnp.stack([ox, oy], axis=-1)


if __name__ == "__main__":
    # Small deterministic setup: 8 PCA components, 16 landmark points, 2D.
    B, K, N, D = 2, 8, 16, 2
    P = K + 4  # shape coeffs + scale + rotation + 2 translations

    key = jax.random.PRNGKey(0)
    k_shapes, k_params = jax.random.split(key)

    # "shapes" ndarray from __init__: row 0 = mean shape, rows 1.. = eigen shapes
    shapes_pca = jax.random.normal(k_shapes, (K + 1, N, D), dtype=jnp.float32)
    shape_mean = shapes_pca[0]            # (N, D)
    shape_components = shapes_pca[1:]     # (K, N, D)

    # params as the torch module expects: (B, num_params, 1, 1)
    params = jax.random.normal(k_params, (B, P, 1, 1), dtype=jnp.float32) * 0.5

    # One-time constant preparation (module init), hoisted out of the forward.
    consts = prepare_shape_constants(shape_mean, shape_components)
    consts = jax.tree.map(jax.block_until_ready, consts)

    fwd = jax.jit(lambda p: homogeneous_shape_layer(p, *consts))
    out = jax.block_until_ready(fwd(params))

    ref = _reference_forward(params, shape_mean, shape_components)
    assert out.shape == (B, N, D)
    assert jnp.allclose(out, ref, atol=1e-5, rtol=1e-5), "mismatch vs reference"

    print("KERNEL_OK")
</pallas_src>

<mosaic_0001>
module attributes {stable_mosaic.version = 11 : i64} {
  func.func @_homogeneous_shape_kernel(%arg0: i32, %arg1: memref<8x12xf32, #tpu.memory_space<vmem>>, %arg2: memref<1x32xf32, #tpu.memory_space<vmem>>, %arg3: memref<1x32xf32, #tpu.memory_space<vmem>>, %arg4: memref<8x32xf32, #tpu.memory_space<vmem>>, %arg5: memref<8x32xf32, #tpu.memory_space<vmem>>, %arg6: memref<8x32xf32, #tpu.memory_space<vmem>>) attributes {dimension_semantics = [#tpu.dimension_semantics<parallel>], iteration_bounds = array<i64: 1>, scalar_prefetch = 0 : i64, scratch_operands = 0 : i64, tpu.core_type = #tpu.core_type<tc>, window_params = [{transform_indices = @transform_0, window_bounds = array<i64: 8, 12>}, {pipeline_mode = #tpu.pipeline_mode<synchronous>, transform_indices = @transform_1, window_bounds = array<i64: 1, 32>}, {pipeline_mode = #tpu.pipeline_mode<synchronous>, transform_indices = @transform_2, window_bounds = array<i64: 1, 32>}, {pipeline_mode = #tpu.pipeline_mode<synchronous>, transform_indices = @transform_3, window_bounds = array<i64: 8, 32>}, {pipeline_mode = #tpu.pipeline_mode<synchronous>, transform_indices = @transform_4, window_bounds = array<i64: 8, 32>}, {transform_indices = @transform_5, window_bounds = array<i64: 8, 32>}]} {
    %c0 = arith.constant 0 : index
    %c0_0 = arith.constant 0 : index
    %0 = vector.load %arg1[%c0, %c0_0] : memref<8x12xf32, #tpu.memory_space<vmem>>, vector<8x8xf32>
    %c0_1 = arith.constant 0 : index
    %c8 = arith.constant 8 : index
    %1 = vector.load %arg1[%c0_1, %c8] : memref<8x12xf32, #tpu.memory_space<vmem>>, vector<8x1xf32>
    %c0_2 = arith.constant 0 : index
    %c9 = arith.constant 9 : index
    %2 = vector.load %arg1[%c0_2, %c9] : memref<8x12xf32, #tpu.memory_space<vmem>>, vector<8x1xf32>
    %c0_3 = arith.constant 0 : index
    %c10 = arith.constant 10 : index
    %3 = vector.load %arg1[%c0_3, %c10] : memref<8x12xf32, #tpu.memory_space<vmem>>, vector<8x1xf32>
    %c0_4 = arith.constant 0 : index
    %c11 = arith.constant 11 : index
    %4 = vector.load %arg1[%c0_4, %c11] : memref<8x12xf32, #tpu.memory_space<vmem>>, vector<8x1xf32>
    %c0_5 = arith.constant 0 : index
    %c0_6 = arith.constant 0 : index
    %5 = vector.load %arg2[%c0_5, %c0_6] : memref<1x32xf32, #tpu.memory_space<vmem>>, vector<1x32xf32>
    %c0_7 = arith.constant 0 : index
    %c0_8 = arith.constant 0 : index
    %6 = vector.load %arg4[%c0_7, %c0_8] : memref<8x32xf32, #tpu.memory_space<vmem>>, vector<8x32xf32>
    %cst = arith.constant dense<0.000000e+00> : vector<8x32xf32>
    %7 = tpu.matmul %0, %6, %cst {dimension_numbers = #tpu.dot_dimension_numbers<[1], [0], [0], [1], [0, 0, 1, 1], [], []>} : vector<8x8xf32>, vector<8x32xf32>, vector<8x32xf32> -> vector<8x32xf32>
    %8 = vector.broadcast %5 : vector<1x32xf32> to vector<8x32xf32>
    %9 = arith.addf %8, %7 : vector<8x32xf32>
    %c0_9 = arith.constant 0 : index
    %c0_10 = arith.constant 0 : index
    %10 = vector.load %arg3[%c0_9, %c0_10] : memref<1x32xf32, #tpu.memory_space<vmem>>, vector<1x32xf32>
    %c0_11 = arith.constant 0 : index
    %c0_12 = arith.constant 0 : index
    %11 = vector.load %arg5[%c0_11, %c0_12] : memref<8x32xf32, #tpu.memory_space<vmem>>, vector<8x32xf32>
    %cst_13 = arith.constant dense<0.000000e+00> : vector<8x32xf32>
    %12 = tpu.matmul %0, %11, %cst_13 {dimension_numbers = #tpu.dot_dimension_numbers<[1], [0], [0], [1], [0, 0, 1, 1], [], []>} : vector<8x8xf32>, vector<8x32xf32>, vector<8x32xf32> -> vector<8x32xf32>
    %13 = vector.broadcast %10 : vector<1x32xf32> to vector<8x32xf32>
    %14 = arith.addf %13, %12 : vector<8x32xf32>
    %15 = math.cos %2 : vector<8x1xf32>
    %16 = arith.mulf %1, %15 : vector<8x1xf32>
    %17 = math.sin %2 : vector<8x1xf32>
    %18 = arith.mulf %1, %17 : vector<8x1xf32>
    %19 = tpu.iota {dimensions = array<i32: 1>} : vector<1x32xi32>
    %c1_i32 = arith.constant 1 : i32
    %20 = vector.broadcast %c1_i32 : i32 to vector<1x32xi32>
    %21 = arith.andi %19, %20 : vector<1x32xi32>
    %c0_i32 = arith.constant 0 : i32
    %22 = vector.broadcast %c0_i32 : i32 to vector<1x32xi32>
    %23 = arith.cmpi eq, %21, %22 : vector<1x32xi32>
    %24 = vector.shape_cast %23 : vector<1x32xi1> to vector<1x32xi1>
    %25 = vector.broadcast %24 : vector<1x32xi1> to vector<8x32xi1>
    %26 = vector.shape_cast %3 : vector<8x1xf32> to vector<8x1xf32>
    %27 = vector.broadcast %26 : vector<8x1xf32> to vector<8x32xf32>
    %28 = vector.shape_cast %4 : vector<8x1xf32> to vector<8x1xf32>
    %29 = vector.broadcast %28 : vector<8x1xf32> to vector<8x32xf32>
    %30 = arith.select %25, %27, %29 : vector<8x32xi1>, vector<8x32xf32>
    %31 = vector.broadcast %16 : vector<8x1xf32> to vector<8x32xf32>
    %32 = arith.mulf %31, %9 : vector<8x32xf32>
    %33 = vector.broadcast %18 : vector<8x1xf32> to vector<8x32xf32>
    %34 = arith.mulf %33, %14 : vector<8x32xf32>
    %35 = arith.addf %32, %34 : vector<8x32xf32>
    %36 = arith.addf %35, %30 : vector<8x32xf32>
    %c0_14 = arith.constant 0 : index
    %c0_15 = arith.constant 0 : index
    %37 = vector.load %arg6[%c0_14, %c0_15] : memref<8x32xf32, #tpu.memory_space<vmem>>, vector<8x32xf32>
    tpu.vector_store %arg6[%c0_14, %c0_15], %36 {strides = array<i32>} : memref<8x32xf32, #tpu.memory_space<vmem>>, vector<8x32xf32>,
    return
  }
  func.func @transform_0(%arg0: i32) -> (i32, i32) {
    %c0_i32 = arith.constant 0 : i32
    %c0_i32_0 = arith.constant 0 : i32
    return %arg0, %c0_i32 : i32, i32
  }
  func.func @transform_1(%arg0: i32) -> (i32, i32) {
    %c0_i32 = arith.constant 0 : i32
    %c0_i32_0 = arith.constant 0 : i32
    %c0_i32_1 = arith.constant 0 : i32
    return %c0_i32, %c0_i32_0 : i32, i32
  }
  func.func @transform_2(%arg0: i32) -> (i32, i32) {
    %c0_i32 = arith.constant 0 : i32
    %c0_i32_0 = arith.constant 0 : i32
    %c0_i32_1 = arith.constant 0 : i32
    return %c0_i32, %c0_i32_0 : i32, i32
  }
  func.func @transform_3(%arg0: i32) -> (i32, i32) {
    %c0_i32 = arith.constant 0 : i32
    %c0_i32_0 = arith.constant 0 : i32
    %c0_i32_1 = arith.constant 0 : i32
    return %c0_i32, %c0_i32_0 : i32, i32
  }
  func.func @transform_4(%arg0: i32) -> (i32, i32) {
    %c0_i32 = arith.constant 0 : i32
    %c0_i32_0 = arith.constant 0 : i32
    %c0_i32_1 = arith.constant 0 : i32
    return %c0_i32, %c0_i32_0 : i32, i32
  }
  func.func @transform_5(%arg0: i32) -> (i32, i32) {
    %c0_i32 = arith.constant 0 : i32
    %c0_i32_0 = arith.constant 0 : i32
    return %arg0, %c0_i32 : i32, i32
  }
}

</mosaic_0001>

<llo_original>
// kernel: _lambda_.1
$region0: #{_lambda_.1}
  #allocation0 [shape = 'u32[]', space=smem, size = 0x4, offset = 0x4, fixed_abs, tag = 'smem constant byte address 0x4 - core index']
  #allocation1 [shape = 'u32[144,128]{1,0:T(1,128)}', space=vmem, size = 0x12000, scoped, tag = 'internal scratch']
  %s0 = inlined_call_operand.vmem [shape: f32[8,12], index: 0, kind: input, shape index: {}]
  %s1 = inlined_call_operand.hbm [shape: f32[1,32], index: 1, kind: input, shape index: {}]
  %s2 = inlined_call_operand.hbm [shape: f32[1,32], index: 2, kind: input, shape index: {}]
  %s3 = inlined_call_operand.vmem [shape: f32[8,32], index: 3, kind: input, shape index: {}]
  %s4 = inlined_call_operand.vmem [shape: f32[8,32], index: 4, kind: input, shape index: {}]
  %s5 = inlined_call_operand.vmem [shape: f32[8,32], index: 5, kind: output, shape index: {}]
  %s6 = sld [smem:[#allocation0]]
  $region38: #{_lambda_.1} parent=0
    _
  %s8 = ssub.s32 1, %s6
  %s9 = scalar_select 0, %s8, %s6
  $region1: #{_lambda_.1} parent=0
    #allocation2 [shape = 'u8[512]{0}', space=vmem, size = 0x400, scoped, tag = 'input window, operand 1, single buffered']
    #allocation3 [shape = 's32[1]{0}', space=sflag, size = 0x4, scoped, tag = 'scoped memory for _lambda_.1']
    #allocation4 [shape = 'u8[512]{0}', space=vmem, size = 0x400, scoped, tag = 'input window, operand 2, single buffered']
    #allocation5 [shape = 's32[1]{0}', space=sflag, size = 0x4, scoped, tag = 'scoped memory for _lambda_.1']
    %10 = vsyncpa [#allocation3], 0
    %11 = vsyncpa [#allocation5], 0
    // Predicated region
    $region2: #{_lambda_.1} parent=1 // pred_check
      _
    $region3: #{_lambda_.1} parent=1 // pred_check_branch
      %13 = sbr.rel (0) target = $region5
    $region4: #{_lambda_.1} parent=1 // pred_region
      _
    $region5: #{_lambda_.1} parent=1 // pred_fallthru
      _
    // Predicated region
    $region6: #{_lambda_.1} parent=1 // pred_check
      _
    $region7: #{_lambda_.1} parent=1 // pred_check_branch
      %15 = sbr.rel (0) target = $region9
    $region8: #{_lambda_.1} parent=1 // pred_region
      %s17 = ssub.s32 16, 16
      %18 = vsyncadd [#allocation3], %s17
      %s20 = sshll.u32 [#allocation2], 4
      %s21 = int_to_ptr.vmem [resolvable:$true] %s20
      %23 = dma.hbm_to_vmem [thread:$0]  %s1, 16, %s21, [#allocation3]
    $region9: #{_lambda_.1} parent=1 // pred_fallthru
      _
    // Predicated region
    $region10: #{_lambda_.1} parent=1 // pred_check
      _
    $region11: #{_lambda_.1} parent=1 // pred_check_branch
      %25 = sbr.rel (0) target = $region13
    $region12: #{_lambda_.1} parent=1 // pred_region
      %s27 = ssub.s32 16, 16
      %28 = vsyncadd [#allocation5], %s27
      %s30 = sshll.u32 [#allocation4], 4
      %s31 = int_to_ptr.vmem [resolvable:$true] %s30
      %33 = dma.hbm_to_vmem [thread:$0]  %s2, 16, %s31, [#allocation5]
    $region13: #{_lambda_.1} parent=1 // pred_fallthru
      _
    // Predicated region
    $region14: #{_lambda_.1} parent=1 // pred_check
      _
    $region15: #{_lambda_.1} parent=1 // pred_check_branch
      %35 = sbr.rel (0) target = $region17
    $region16: #{_lambda_.1} parent=1 // pred_region
      _
    $region17: #{_lambda_.1} parent=1 // pred_fallthru
      _
    // Predicated region
    $region18: #{_lambda_.1} parent=1 // pred_check
      _
    $region19: #{_lambda_.1} parent=1 // pred_check_branch
      %37 = sbr.rel (0) target = $region21
    $region20: #{_lambda_.1} parent=1 // pred_region
      _
    $region21: #{_lambda_.1} parent=1 // pred_fallthru
      _
    // Predicated region
    $region22: #{_lambda_.1} parent=1 // pred_check
      _
    $region23: #{_lambda_.1} parent=1 // pred_check_branch
      %39 = sbr.rel (0) target = $region25
    $region24: #{_lambda_.1} parent=1 // pred_region
      %40 = dma.done [#allocation3], 16
    $region25: #{_lambda_.1} parent=1 // pred_fallthru
      _
    // Predicated region
    $region26: #{_lambda_.1} parent=1 // pred_check
      _
    $region27: #{_lambda_.1} parent=1 // pred_check_branch
      %42 = sbr.rel (0) target = $region29
    $region28: #{_lambda_.1} parent=1 // pred_region
      %43 = dma.done [#allocation5], 16
    $region29: #{_lambda_.1} parent=1 // pred_fallthru
      _
    %v44 = vld [vmem:[%s0] sm:$0xff]
    %v45 = vld [vmem:[#allocation2] sm:$0x1]
    %v46 = vld [vmem:[%s3] sm:$0xff]
    %vm47 = vcmask 64512
    %v49 = vsel %vm47, %v44, 0
    %51 = vmatprep.subr.mxu0 0.0
    %52 = vmatpush1.msra.mxu0 0.0
    %53 = vmatprep.subr.mxu0 0.0
    %54 = vmatpush1.msra.mxu0 0.0
    %55 = vmatprep.subr.mxu0 0.0
    %56 = vmatpush1.msra.mxu0 0.0
    %57 = vmatprep.subr.mxu0 0.0
    %58 = vmatpush1.msra.mxu0 0.0
    %59 = vmatprep.subr.mxu0 0.0
    %60 = vmatpush1.msra.mxu0 0.0
    %61 = vmatprep.subr.mxu0 0.0
    %62 = vmatpush1.msra.mxu0 0.0
    %63 = vmatprep.subr.mxu0 0.0
    %64 = vmatpush1.msra.mxu0 0.0
    %65 = vmatprep.subr.mxu0 0.0
    %66 = vmatpush1.msra.mxu0 0.0
    %67 = vmatprep.subr.mxu0 0.0
    %68 = vmatpush1.msra.mxu0 0.0
    %69 = vmatprep.subr.mxu0 0.0
    %70 = vmatpush1.msra.mxu0 0.0
    %71 = vmatprep.subr.mxu0 0.0
    %72 = vmatpush1.msra.mxu0 0.0
    %73 = vmatprep.subr.mxu0 0.0
    %74 = vmatpush1.msra.mxu0 0.0
    %75 = vmatprep.subr.mxu0 0.0
    %76 = vmatpush1.msra.mxu0 0.0
    %77 = vmatprep.subr.mxu0 0.0
    %78 = vmatpush1.msra.mxu0 0.0
    %79 = vmatprep.subr.mxu0 0.0
    %80 = vmatpush1.msra.mxu0 0.0
    %81 = vmatprep.subr.mxu0 0.0
    %82 = vmatpush1.msra.mxu0 %v46
    %83 = vmatprep.subr.mxu0 0.0
    %84 = vmatpush2.msra.mxu0 0.0
    %85 = vmatprep.subr.mxu0 0.0
    %86 = vmatpush2.msra.mxu0 0.0
    %87 = vmatprep.subr.mxu0 0.0
    %88 = vmatpush2.msra.mxu0 0.0
    %89 = vmatprep.subr.mxu0 0.0
    %90 = vmatpush2.msra.mxu0 0.0
    %91 = vmatprep.subr.mxu0 0.0
    %92 = vmatpush2.msra.mxu0 0.0
    %93 = vmatprep.subr.mxu0 0.0
    %94 = vmatpush2.msra.mxu0 0.0
    %95 = vmatprep.subr.mxu0 0.0
    %96 = vmatpush2.msra.mxu0 0.0
    %97 = vmatprep.subr.mxu0 0.0
    %98 = vmatpush2.msra.mxu0 0.0
    %99 = vmatprep.subr.mxu0 0.0
    %100 = vmatpush2.msra.mxu0 0.0
    %101 = vmatprep.subr.mxu0 0.0
    %102 = vmatpush2.msra.mxu0 0.0
    %103 = vmatprep.subr.mxu0 0.0
    %104 = vmatpush2.msra.mxu0 0.0
    %105 = vmatprep.subr.mxu0 0.0
    %106 = vmatpush2.msra.mxu0 0.0
    %107 = vmatprep.subr.mxu0 0.0
    %108 = vmatpush2.msra.mxu0 0.0
    %109 = vmatprep.subr.mxu0 0.0
    %110 = vmatpush2.msra.mxu0 0.0
    %111 = vmatprep.subr.mxu0 0.0
    %112 = vmatpush2.msra.mxu0 0.0
    %113 = vmatprep.subr.mxu0 0.0
    %114 = vmatpush2.msra.mxu0 0.0
    %115 = vmatprep.mubr.f32.mxu0 0.0
    %116 = vmatmul.mubr.f32.gmra.mxu0 %v49
    %v117 = vpop.f32.mrf.mxu0
    %v118 = vadd.f32 0.0, %v117
    %v119 = vpop.f32.mrf.mxu0
    %120 = vdwg.mxu0
    %v122 = vlaneseq
    %v123 = vshrl.u32 %v122, 7
    %v124 = vsub.s32 0, %v123
    %v125 = vrot.slane %v45, %v124
    %v127 = vadd.f32 %v125, %v118
    %v128 = vld [vmem:[#allocation4] sm:$0x1]
    %v129 = vld [vmem:[%s4] sm:$0xff]
    %130 = vmatprep.subr.mxu0 0.0
    %131 = vmatpush1.msra.mxu0 0.0
    %132 = vmatprep.subr.mxu0 0.0
    %133 = vmatpush1.msra.mxu0 0.0
    %134 = vmatprep.subr.mxu0 0.0
    %135 = vmatpush1.msra.mxu0 0.0
    %136 = vmatprep.subr.mxu0 0.0
    %137 = vmatpush1.msra.mxu0 0.0
    %138 = vmatprep.subr.mxu0 0.0
    %139 = vmatpush1.msra.mxu0 0.0
    %140 = vmatprep.subr.mxu0 0.0
    %141 = vmatpush1.msra.mxu0 0.0
    %142 = vmatprep.subr.mxu0 0.0
    %143 = vmatpush1.msra.mxu0 0.0
    %144 = vmatprep.subr.mxu0 0.0
    %145 = vmatpush1.msra.mxu0 0.0
    %146 = vmatprep.subr.mxu0 0.0
    %147 = vmatpush1.msra.mxu0 0.0
    %148 = vmatprep.subr.mxu0 0.0
    %149 = vmatpush1.msra.mxu0 0.0
    %150 = vmatprep.subr.mxu0 0.0
    %151 = vmatpush1.msra.mxu0 0.0
    %152 = vmatprep.subr.mxu0 0.0
    %153 = vmatpush1.msra.mxu0 0.0
    %154 = vmatprep.subr.mxu0 0.0
    %155 = vmatpush1.msra.mxu0 0.0
    %156 = vmatprep.subr.mxu0 0.0
    %157 = vmatpush1.msra.mxu0 0.0
    %158 = vmatprep.subr.mxu0 0.0
    %159 = vmatpush1.msra.mxu0 0.0
    %160 = vmatprep.subr.mxu0 0.0
    %161 = vmatpush1.msra.mxu0 %v129
    %162 = vmatprep.subr.mxu0 0.0
    %163 = vmatpush2.msra.mxu0 0.0
    %164 = vmatprep.subr.mxu0 0.0
    %165 = vmatpush2.msra.mxu0 0.0
    %166 = vmatprep.subr.mxu0 0.0
    %167 = vmatpush2.msra.mxu0 0.0
    %168 = vmatprep.subr.mxu0 0.0
    %169 = vmatpush2.msra.mxu0 0.0
    %170 = vmatprep.subr.mxu0 0.0
    %171 = vmatpush2.msra.mxu0 0.0
    %172 = vmatprep.subr.mxu0 0.0
    %173 = vmatpush2.msra.mxu0 0.0
    %174 = vmatprep.subr.mxu0 0.0
    %175 = vmatpush2.msra.mxu0 0.0
    %176 = vmatprep.subr.mxu0 0.0
    %177 = vmatpush2.msra.mxu0 0.0
    %178 = vmatprep.subr.mxu0 0.0
    %179 = vmatpush2.msra.mxu0 0.0
    %180 = vmatprep.subr.mxu0 0.0
    %181 = vmatpush2.msra.mxu0 0.0
    %182 = vmatprep.subr.mxu0 0.0
    %183 = vmatpush2.msra.mxu0 0.0
    %184 = vmatprep.subr.mxu0 0.0
    %185 = vmatpush2.msra.mxu0 0.0
    %186 = vmatprep.subr.mxu0 0.0
    %187 = vmatpush2.msra.mxu0 0.0
    %188 = vmatprep.subr.mxu0 0.0
    %189 = vmatpush2.msra.mxu0 0.0
    %190 = vmatprep.subr.mxu0 0.0
    %191 = vmatpush2.msra.mxu0 0.0
    %192 = vmatprep.subr.mxu0 0.0
    %193 = vmatpush2.msra.mxu0 0.0
    %194 = vmatprep.mubr.f32.mxu0 0.0
    %195 = vmatmul.mubr.f32.gmra.mxu0 %v49
    %v196 = vpop.f32.mrf.mxu0
    %v197 = vadd.f32 0.0, %v196
    %v198 = vpop.f32.mrf.mxu0
    %199 = vdwg.mxu0
    %v201 = vlaneseq
    %v202 = vshrl.u32 %v201, 7
    %v203 = vsub.s32 0, %v202
    %v204 = vrot.slane %v128, %v203
    %v206 = vadd.f32 %v204, %v197
    %v207 = vand.u32 2147483647, %v44
    %vm208 = vcmp.le.f32.partialorder %v207, 0.7853982
    %vm209 = vcmp.lt.s32.totalorder %v44, 0
    %v210 = vand.u32 %v44, 2139095040
    %v211 = vshrl.u32 %v210, 23
    %v212 = vsub.s32 %v211, 127
    %v213 = vand.u32 2147483647, %v44
    %v214 = vand.u32 %v213, 8388607
    %v215 = vor.u32 %v214, 8388608
    %v216 = vsub.s32 0, %v215
    %v217 = vadd.s32 %v212, 1
    %vm218 = vcmp.gt.s32.totalorder %v217, 0
    %v219 = vsel %vm218, %v217, 0
    %v220 = vshrl.u32 %v219, 5
    %v221 = vand.u32 %v219, 31
    %v222 = vsub.s32 32, %v221
    %v223 = vshrl.u32 683565275, %v222
    %v224 = vshll.u32 683565275, %v221
    %v225 = vshrl.u32 2475754826, %v222
    %v226 = vor.u32 %v224, %v225
    %v227 = vshll.u32 2475754826, %v221
    %v228 = vshrl.u32 2131351028, %v222
    %v229 = vor.u32 %v227, %v228
    %v230 = vshll.u32 2131351028, %v221
    %v231 = vshrl.u32 2102212464, %v222
    %v232 = vor.u32 %v230, %v231
    %v233 = vshll.u32 2102212464, %v221
    %v234 = vshrl.u32 920167782, %v222
    %v235 = vor.u32 %v233, %v234
    %v236 = vshll.u32 920167782, %v221
    %v237 = vshrl.u32 1326507024, %v222
    %v238 = vor.u32 %v236, %v237
    %vm239 = vcmp.lt.s32.totalorder %v220, 1
    %vm240 = vcmp.lt.s32.totalorder %v220, 2
    %vm241 = vcmp.lt.s32.totalorder %v220, 3
    %vm242 = vcmp.lt.s32.totalorder %v220, 4
    %v243 = vsel %vm239, %v223, %v226
    %v244 = vsel %vm242, %v232, 2102212464
    %v245 = vsel %vm241, %v229, %v244
    %v246 = vsel %vm240, %v243, %v245
    %v247 = vsel %vm239, %v226, %v229
    %v248 = vsel %vm242, %v235, 920167782
    %v249 = vsel %vm241, %v232, %v248
    %v250 = vsel %vm240, %v247, %v249
    %v251 = vsel %vm239, %v229, %v232
    %v252 = vsel %vm242, %v238, 1326507024
    %v253 = vsel %vm241, %v235, %v252
    %v254 = vsel %vm240, %v251, %v253
    %v255 = vshll.u32 %v215, 8
    %v256 = vmul.u32.u64.compose %v255, %v254
    %v257 = vextract.low.u32 %v256
    %v258 = vextract.high.u32 %v256
    %v259 = vmul.u32.u64.compose %v255, %v250
    %v260 = vextract.low.u32 %v259
    %v261 = vextract.high.u32 %v259
    %v262 = vmul.u32 %v255, %v246
    %v263 = vadd.s32 %v258, %v260
    %vm264 = vc.u32 %v258, %v260
    %v265 = vadd.s32 %v261, 1
    %v266 = vsel %vm264, %v265, %v261
    %v267 = vadd.s32 %v262, %v266
    %v268 = vadd.s32 %v267, 536870912
    %v269 = vshrl.u32 %v268, 30
    %v270 = vshll.u32 %v269, 30
    %v271 = vsub.s32 %v267, %v270
    %vm272 = vcmp.lt.s32.totalorder %v271, 0
    %v273 = vsub.s32 0, %v271
    %v274 = vsel %vm272, %v273, %v271
    %v275 = vclz %v274
    %v276 = vsub.s32 %v275, 2
    %vm277 = vcmp.gt.s32.totalorder 0, %v276
    %v278 = vsel %vm277, 0, %v276
    %v279 = vsub.s32 32, %v278
    %v280 = vshll.u32 %v271, %v278
    %v281 = vshrl.u32 %v263, %v279
    %v282 = vor.u32 %v280, %v281
    %v283 = vsub.s32 4294967266, %v278
    %v284 = vadd.s32 %v283, 127
    %v285 = vshll.u32 %v284, 23
    %v286 = vor.u32 4788187, %v285
    %v287 = vand.u32 2147483647, %v286
    %v289 = vcvt.s32.f32 %v282
    %v290 = vmul.f32 %v289, %v287
    %v291 = vxor.u32 %v290, 2147483648
    %v292 = vsel %vm209, %v291, %v290
    %v293 = vsub.s32 4, %v269
    %v294 = vsel %vm209, %v293, %v269
    %v295 = vsel %vm208, %v44, %v292
    %v296 = vsel %vm208, 0, %v294
    %v297 = vcosq.f32.pop %v295
    %v298 = vsinq.f32.pop %v295
    %vm299 = vweird.f32 %v44
    %v300 = vand.u32 %v296, 3
    %vm301 = vcmp.lt.s32.totalorder %v300, 2
    %vm302 = vcmp.eq.s32.totalorder %v300, 0
    %v303 = vxor.u32 %v298, 2147483648
    %v304 = vsel %vm302, %v297, %v303
    %vm305 = vcmp.eq.s32.totalorder %v300, 2
    %v306 = vxor.u32 %v297, 2147483648
    %v307 = vsel %vm305, %v306, %v298
    %v308 = vsel %vm301, %v304, %v307
    %v309 = vsel %vm299, nan, %v308
    %311 = vrot.lane.b32.xlu0 %v309, 127
    %v312 = vpop.permute.xlu0 %311
    %v314 = vmul.f32 %v44, %v312
    %v315 = vand.u32 2147483647, %v44
    %vm316 = vcmp.le.f32.partialorder %v315, 0.7853982
    %vm317 = vcmp.lt.s32.totalorder %v44, 0
    %v318 = vand.u32 %v44, 2139095040
    %v319 = vshrl.u32 %v318, 23
    %v320 = vsub.s32 %v319, 127
    %v321 = vand.u32 2147483647, %v44
    %v322 = vand.u32 %v321, 8388607
    %v323 = vor.u32 %v322, 8388608
    %v324 = vsub.s32 0, %v323
    %v325 = vadd.s32 %v320, 1
    %vm326 = vcmp.gt.s32.totalorder %v325, 0
    %v327 = vsel %vm326, %v325, 0
    %v328 = vshrl.u32 %v327, 5
    %v329 = vand.u32 %v327, 31
    %v330 = vsub.s32 32, %v329
    %v331 = vshrl.u32 683565275, %v330
    %v332 = vshll.u32 683565275, %v329
    %v333 = vshrl.u32 2475754826, %v330
    %v334 = vor.u32 %v332, %v333
    %v335 = vshll.u32 2475754826, %v329
    %v336 = vshrl.u32 2131351028, %v330
    %v337 = vor.u32 %v335, %v336
    %v338 = vshll.u32 2131351028, %v329
    %v339 = vshrl.u32 2102212464, %v330
    %v340 = vor.u32 %v338, %v339
    %v341 = vshll.u32 2102212464, %v329
    %v342 = vshrl.u32 920167782, %v330
    %v343 = vor.u32 %v341, %v342
    %v344 = vshll.u32 920167782, %v329
    %v345 = vshrl.u32 1326507024, %v330
    %v346 = vor.u32 %v344, %v345
    %vm347 = vcmp.lt.s32.totalorder %v328, 1
    %vm348 = vcmp.lt.s32.totalorder %v328, 2
    %vm349 = vcmp.lt.s32.totalorder %v328, 3
    %vm350 = vcmp.lt.s32.totalorder %v328, 4
    %v351 = vsel %vm347, %v331, %v334
    %v352 = vsel %vm350, %v340, 2102212464
    %v353 = vsel %vm349, %v337, %v352
    %v354 = vsel %vm348, %v351, %v353
    %v355 = vsel %vm347, %v334, %v337
    %v356 = vsel %vm350, %v343, 920167782
    %v357 = vsel %vm349, %v340, %v356
    %v358 = vsel %vm348, %v355, %v357
    %v359 = vsel %vm347, %v337, %v340
    %v360 = vsel %vm350, %v346, 1326507024
    %v361 = vsel %vm349, %v343, %v360
    %v362 = vsel %vm348, %v359, %v361
    %v363 = vshll.u32 %v323, 8
    %v364 = vmul.u32.u64.compose %v363, %v362
    %v365 = vextract.low.u32 %v364
    %v366 = vextract.high.u32 %v364
    %v367 = vmul.u32.u64.compose %v363, %v358
    %v368 = vextract.low.u32 %v367
    %v369 = vextract.high.u32 %v367
    %v370 = vmul.u32 %v363, %v354
    %v371 = vadd.s32 %v366, %v368
    %vm372 = vc.u32 %v366, %v368
    %v373 = vadd.s32 %v369, 1
    %v374 = vsel %vm372, %v373, %v369
    %v375 = vadd.s32 %v370, %v374
    %v376 = vadd.s32 %v375, 536870912
    %v377 = vshrl.u32 %v376, 30
    %v378 = vshll.u32 %v377, 30
    %v379 = vsub.s32 %v375, %v378
    %vm380 = vcmp.lt.s32.totalorder %v379, 0
    %v381 = vsub.s32 0, %v379
    %v382 = vsel %vm380, %v381, %v379
    %v383 = vclz %v382
    %v384 = vsub.s32 %v383, 2
    %vm385 = vcmp.gt.s32.totalorder 0, %v384
    %v386 = vsel %vm385, 0, %v384
    %v387 = vsub.s32 32, %v386
    %v388 = vshll.u32 %v379, %v386
    %v389 = vshrl.u32 %v371, %v387
    %v390 = vor.u32 %v388, %v389
    %v391 = vsub.s32 4294967266, %v386
    %v392 = vadd.s32 %v391, 127
    %v393 = vshll.u32 %v392, 23
    %v394 = vor.u32 4788187, %v393
    %v395 = vand.u32 2147483647, %v394
    %v397 = vcvt.s32.f32 %v390
    %v398 = vmul.f32 %v397, %v395
    %v399 = vxor.u32 %v398, 2147483648
    %v400 = vsel %vm317, %v399, %v398
    %v401 = vsub.s32 4, %v377
    %v402 = vsel %vm317, %v401, %v377
    %v403 = vsel %vm316, %v44, %v400
    %v404 = vsel %vm316, 0, %v402
    %v405 = vcosq.f32.pop %v403
    %v406 = vsinq.f32.pop %v403
    %vm407 = vweird.f32 %v44
    %v408 = vadd.s32 %v404, 3
    %v409 = vand.u32 %v408, 3
    %vm410 = vcmp.lt.s32.totalorder %v409, 2
    %vm411 = vcmp.eq.s32.totalorder %v409, 0
    %v412 = vxor.u32 %v406, 2147483648
    %v413 = vsel %vm411, %v405, %v412
    %vm414 = vcmp.eq.s32.totalorder %v409, 2
    %v415 = vxor.u32 %v405, 2147483648
    %v416 = vsel %vm414, %v415, %v406
    %v417 = vsel %vm410, %v413, %v416
    %v418 = vsel %vm407, nan, %v417
    %420 = vrot.lane.b32.xlu0 %v418, 127
    %v421 = vpop.permute.xlu0 %420
    %v423 = vmul.f32 %v44, %v421
    %v424 = vlaneseq
    %v425 = vand.u32 %v424, 127
    %v426 = vand.u32 %v425, 1
    %vm427 = vcmp.eq.s32.totalorder %v426, 0
    %v428 = vsel %vm427, 1, 0
    %vm429 = vcmp.eq.s32.totalorder %v428, 1
    %430 = vset.pattern.permute.xlu0 10
    %431 = vperm.xlu0 %430, %v44
    %v432 = vpop.permute.xlu0 %431
    %434 = vset.pattern.permute.xlu0 11
    %435 = vperm.xlu0 %434, %v44
    %v436 = vpop.permute.xlu0 %435
    %v438 = vsel %vm429, %v432, %v436
    %440 = vset.pattern.permute.xlu0 8
    %441 = vperm.xlu0 %440, %v314
    %v442 = vpop.permute.xlu0 %441
    %v444 = vmul.f32 %v442, %v127
    %446 = vset.pattern.permute.xlu0 8
    %447 = vperm.xlu0 %446, %v423
    %v448 = vpop.permute.xlu0 %447
    %v450 = vmul.f32 %v448, %v206
    %v451 = vadd.f32 %v444, %v450
    %v452 = vadd.f32 %v451, %v438
    %vm453 = vcmask 261120
    %454 = vst.msk [vmem:[%s5] sm:$0xff] %vm453, %v452
    // Predicated region
    $region30: #{_lambda_.1} parent=1 // pred_check
      _
    $region31: #{_lambda_.1} parent=1 // pred_check_branch
      %456 = sbr.rel (0) target = $region33
    $region32: #{_lambda_.1} parent=1 // pred_region
      _
    $region33: #{_lambda_.1} parent=1 // pred_fallthru
      _
    // Predicated region
    $region34: #{_lambda_.1} parent=1 // pred_check
      _
    $region35: #{_lambda_.1} parent=1 // pred_check_branch
      %458 = sbr.rel (0) target = $region37
    $region36: #{_lambda_.1} parent=1 // pred_region
      _
    $region37: #{_lambda_.1} parent=1 // pred_fallthru
      _
    %459 = vsyncpa [#allocation3], 1
    %460 = vsyncpa [#allocation5], 1

</llo_original>
